<compile_context>
chip_gen: v5e
topology: v5e:2x2
jax: 0.10.0
libtpu: 0.0.40
codegen_flags: <defaults>
</compile_context>

<pallas_src>
import jax
import jax.numpy as jnp
from jax.experimental import pallas as pl
from jax.experimental.pallas import tpu as pltpu

IN_FEATURES = 3
OUT_FEATURES = 3


def mlp_kernel(w1_ref, w2_ref, x_ref, o_ref):
    # w1_ref, w2_ref: (3, 3) f32 in VMEM (same block every grid step), PyTorch (out, in)
    # x_ref: (3, tb) f32 in VMEM   (features on sublanes, batch on lanes)
    # o_ref: (3, tb) f32 in VMEM
    x = x_ref[...]        # (3, tb)
    w1 = w1_ref[...]      # (3, 3)
    w2 = w2_ref[...]      # (3, 3)

    # Layer 1: h = relu(W1 @ x) via column-broadcast FMAs on (3, tb) slabs.
    h = w1[:, 0:1] * x[0:1, :]
    h = h + w1[:, 1:2] * x[1:2, :]
    h = h + w1[:, 2:3] * x[2:3, :]
    h = jnp.maximum(h, 0.0)

    # Layer 2: y = W2 @ h
    y = w2[:, 0:1] * h[0:1, :]
    y = y + w2[:, 1:2] * h[1:2, :]
    y = y + w2[:, 2:3] * h[2:3, :]

    # Single lane-dense store of the whole (3, tb) tile (no concatenate/relayout).
    o_ref[...] = y.astype(o_ref.dtype)


def _pick_tile(batch, tb_max):
    # Aim for >= 8 grid steps (v7x megacore sharding + DMA/compute overlap),
    # never below one 128-lane tile, never above tb_max (VMEM budget).
    target = -(-batch // 8)                         # cdiv(batch, 8)
    tb = max(128, ((target + 127) // 128) * 128)    # round up to 128 lanes
    return min(tb, tb_max)


def my_module_forward_feature_major(x_fm, w1, w2, *, tb_max=65536):
    """Feature-major forward: x_fm is (3, B) f32; returns (3, B) f32.

    This is the HBM-roofline path (no transposes / pads in the wrapper).
    """
    F, B = x_fm.shape
    assert F == IN_FEATURES
    tb = _pick_tile(B, tb_max)
    n_tiles = pl.cdiv(B, tb)

    # ~4 buffers x (8-sublane-padded) 8*tb*4 B = 128*tb bytes, plus slack.
    vmem_limit = max(128 * tb + (4 << 20), 16 << 20)

    return pl.pallas_call(
        mlp_kernel,
        out_shape=jax.ShapeDtypeStruct((OUT_FEATURES, B), jnp.float32),
        grid=(n_tiles,),
        in_specs=[
            pl.BlockSpec((OUT_FEATURES, IN_FEATURES), lambda i: (0, 0)),  # w1 (VMEM resident)
            pl.BlockSpec((OUT_FEATURES, IN_FEATURES), lambda i: (0, 0)),  # w2 (VMEM resident)
            pl.BlockSpec((IN_FEATURES, tb), lambda i: (0, i)),            # x tile
        ],
        out_specs=pl.BlockSpec((OUT_FEATURES, tb), lambda i: (0, i)),
        compiler_params=pltpu.CompilerParams(
            dimension_semantics=("parallel",),   # shard batch tiles across TCs (v7x)
            vmem_limit_bytes=vmem_limit,
        ),
        cost_estimate=pl.CostEstimate(
            flops=2 * (2 * IN_FEATURES * OUT_FEATURES) * B,  # two 3x3 layers, mul+add
            transcendentals=0,
            bytes_accessed=(IN_FEATURES + OUT_FEATURES) * B * 4 + 2 * 9 * 4,
        ),
    )(w1, w2, x_fm)


def my_module_forward(x, w1, w2, *, tb_max=65536):
    """PyTorch-compatible wrapper: x is (B, 3); returns (B, 3).

    The two transposes are pure layout plumbing and each cost a full HBM pass;
    callers that keep activations feature-major should use
    my_module_forward_feature_major directly.
    """
    # TODO(synk): fuse these transposes into the producer/consumer of the
    # surrounding model instead of materializing them here.
    B, F = x.shape
    assert F == IN_FEATURES
    out_fm = my_module_forward_feature_major(x.T, w1, w2, tb_max=tb_max)
    return out_fm.T


def init_params(key):
    # Deterministic synthetic init mimicking nn.Linear's uniform(-1/sqrt(in), 1/sqrt(in))
    k1, k2 = jax.random.split(key)
    bound = 1.0 / jnp.sqrt(jnp.float32(IN_FEATURES))
    w1 = jax.random.uniform(k1, (OUT_FEATURES, IN_FEATURES), jnp.float32, -bound, bound)
    w2 = jax.random.uniform(k2, (OUT_FEATURES, IN_FEATURES), jnp.float32, -bound, bound)
    return w1, w2


if __name__ == "__main__":
    key = jax.random.PRNGKey(0)
    k_in1, k_in2, k_params = jax.random.split(key, 3)
    w1, w2 = init_params(k_params)

    # Small batch consistent with the module's (N, 3) input.
    B1 = 8
    x1 = jax.random.normal(k_in1, (B1, IN_FEATURES), jnp.float32)
    out1 = jax.block_until_ready(my_module_forward(x1, w1, w2))
    ref1 = jnp.maximum(x1 @ w1.T, 0.0) @ w2.T
    assert out1.shape == (B1, OUT_FEATURES)
    assert jnp.allclose(out1, ref1, atol=1e-5, rtol=1e-5)

    # Non-multiple-of-tile batch exercises the partial last block (no explicit pad).
    B2 = 300
    x2 = jax.random.normal(k_in2, (B2, IN_FEATURES), jnp.float32)
    out2 = jax.block_until_ready(my_module_forward(x2, w1, w2))
    ref2 = jnp.maximum(x2 @ w1.T, 0.0) @ w2.T
    assert out2.shape == (B2, OUT_FEATURES)
    assert jnp.allclose(out2, ref2, atol=1e-5, rtol=1e-5)

    print("KERNEL_OK")
</pallas_src>

<mosaic_0001>
module attributes {stable_mosaic.version = 11 : i64} {
  func.func @mlp_kernel(%arg0: i32, %arg1: memref<3x3xf32, #tpu.memory_space<vmem>>, %arg2: memref<3x3xf32, #tpu.memory_space<vmem>>, %arg3: memref<3x128xf32, #tpu.memory_space<vmem>>, %arg4: memref<3x128xf32, #tpu.memory_space<vmem>>) attributes {dimension_semantics = [#tpu.dimension_semantics<parallel>], iteration_bounds = array<i64: 1>, scalar_prefetch = 0 : i64, scratch_operands = 0 : i64, tpu.core_type = #tpu.core_type<tc>, window_params = [{pipeline_mode = #tpu.pipeline_mode<synchronous>, transform_indices = @transform_0, window_bounds = array<i64: 3, 3>}, {pipeline_mode = #tpu.pipeline_mode<synchronous>, transform_indices = @transform_1, window_bounds = array<i64: 3, 3>}, {transform_indices = @transform_2, window_bounds = array<i64: 3, 128>}, {transform_indices = @transform_3, window_bounds = array<i64: 3, 128>}]} {
    %c0 = arith.constant 0 : index
    %c0_0 = arith.constant 0 : index
    %0 = vector.load %arg3[%c0, %c0_0] : memref<3x128xf32, #tpu.memory_space<vmem>>, vector<3x128xf32>
    %c0_1 = arith.constant 0 : index
    %c0_2 = arith.constant 0 : index
    %1 = vector.load %arg1[%c0_1, %c0_2] : memref<3x3xf32, #tpu.memory_space<vmem>>, vector<3x3xf32>
    %c0_3 = arith.constant 0 : index
    %c0_4 = arith.constant 0 : index
    %2 = vector.load %arg2[%c0_3, %c0_4] : memref<3x3xf32, #tpu.memory_space<vmem>>, vector<3x3xf32>
    %3 = vector.extract_strided_slice %1 {offsets = [0, 0], sizes = [3, 1], strides = [1, 1]} : vector<3x3xf32> to vector<3x1xf32>
    %4 = vector.extract_strided_slice %0 {offsets = [0, 0], sizes = [1, 128], strides = [1, 1]} : vector<3x128xf32> to vector<1x128xf32>
    %5 = vector.broadcast %3 : vector<3x1xf32> to vector<3x128xf32>
    %6 = vector.broadcast %4 : vector<1x128xf32> to vector<3x128xf32>
    %7 = arith.mulf %5, %6 : vector<3x128xf32>
    %8 = vector.extract_strided_slice %1 {offsets = [0, 1], sizes = [3, 1], strides = [1, 1]} : vector<3x3xf32> to vector<3x1xf32>
    %9 = vector.extract_strided_slice %0 {offsets = [1, 0], sizes = [1, 128], strides = [1, 1]} : vector<3x128xf32> to vector<1x128xf32>
    %10 = vector.broadcast %8 : vector<3x1xf32> to vector<3x128xf32>
    %11 = vector.broadcast %9 : vector<1x128xf32> to vector<3x128xf32>
    %12 = arith.mulf %10, %11 : vector<3x128xf32>
    %13 = arith.addf %7, %12 : vector<3x128xf32>
    %14 = vector.extract_strided_slice %1 {offsets = [0, 2], sizes = [3, 1], strides = [1, 1]} : vector<3x3xf32> to vector<3x1xf32>
    %15 = vector.extract_strided_slice %0 {offsets = [2, 0], sizes = [1, 128], strides = [1, 1]} : vector<3x128xf32> to vector<1x128xf32>
    %16 = vector.broadcast %14 : vector<3x1xf32> to vector<3x128xf32>
    %17 = vector.broadcast %15 : vector<1x128xf32> to vector<3x128xf32>
    %18 = arith.mulf %16, %17 : vector<3x128xf32>
    %19 = arith.addf %13, %18 : vector<3x128xf32>
    %cst = arith.constant 0.000000e+00 : f32
    %20 = vector.broadcast %cst : f32 to vector<3x128xf32>
    %21 = arith.maximumf %19, %20 : vector<3x128xf32>
    %22 = vector.extract_strided_slice %2 {offsets = [0, 0], sizes = [3, 1], strides = [1, 1]} : vector<3x3xf32> to vector<3x1xf32>
    %23 = vector.extract_strided_slice %21 {offsets = [0, 0], sizes = [1, 128], strides = [1, 1]} : vector<3x128xf32> to vector<1x128xf32>
    %24 = vector.broadcast %22 : vector<3x1xf32> to vector<3x128xf32>
    %25 = vector.broadcast %23 : vector<1x128xf32> to vector<3x128xf32>
    %26 = arith.mulf %24, %25 : vector<3x128xf32>
    %27 = vector.extract_strided_slice %2 {offsets = [0, 1], sizes = [3, 1], strides = [1, 1]} : vector<3x3xf32> to vector<3x1xf32>
    %28 = vector.extract_strided_slice %21 {offsets = [1, 0], sizes = [1, 128], strides = [1, 1]} : vector<3x128xf32> to vector<1x128xf32>
    %29 = vector.broadcast %27 : vector<3x1xf32> to vector<3x128xf32>
    %30 = vector.broadcast %28 : vector<1x128xf32> to vector<3x128xf32>
    %31 = arith.mulf %29, %30 : vector<3x128xf32>
    %32 = arith.addf %26, %31 : vector<3x128xf32>
    %33 = vector.extract_strided_slice %2 {offsets = [0, 2], sizes = [3, 1], strides = [1, 1]} : vector<3x3xf32> to vector<3x1xf32>
    %34 = vector.extract_strided_slice %21 {offsets = [2, 0], sizes = [1, 128], strides = [1, 1]} : vector<3x128xf32> to vector<1x128xf32>
    %35 = vector.broadcast %33 : vector<3x1xf32> to vector<3x128xf32>
    %36 = vector.broadcast %34 : vector<1x128xf32> to vector<3x128xf32>
    %37 = arith.mulf %35, %36 : vector<3x128xf32>
    %38 = arith.addf %32, %37 : vector<3x128xf32>
    %c0_5 = arith.constant 0 : index
    %c0_6 = arith.constant 0 : index
    %39 = vector.load %arg4[%c0_5, %c0_6] : memref<3x128xf32, #tpu.memory_space<vmem>>, vector<3x128xf32>
    tpu.vector_store %arg4[%c0_5, %c0_6], %38 {strides = array<i32>} : memref<3x128xf32, #tpu.memory_space<vmem>>, vector<3x128xf32>,
    return
  }
  func.func @transform_0(%arg0: i32) -> (i32, i32) {
    %c0_i32 = arith.constant 0 : i32
    %c0_i32_0 = arith.constant 0 : i32
    %c0_i32_1 = arith.constant 0 : i32
    return %c0_i32, %c0_i32_0 : i32, i32
  }
  func.func @transform_1(%arg0: i32) -> (i32, i32) {
    %c0_i32 = arith.constant 0 : i32
    %c0_i32_0 = arith.constant 0 : i32
    %c0_i32_1 = arith.constant 0 : i32
    return %c0_i32, %c0_i32_0 : i32, i32
  }
  func.func @transform_2(%arg0: i32) -> (i32, i32) {
    %c0_i32 = arith.constant 0 : i32
    %c0_i32_0 = arith.constant 0 : i32
    return %c0_i32, %arg0 : i32, i32
  }
  func.func @transform_3(%arg0: i32) -> (i32, i32) {
    %c0_i32 = arith.constant 0 : i32
    %c0_i32_0 = arith.constant 0 : i32
    return %c0_i32, %arg0 : i32, i32
  }
}

</mosaic_0001>

<llo_original>
// kernel: tpu_custom_call.1
$region0: #{tpu_custom_call.1}
  #allocation0 [shape = 'u32[]', space=smem, size = 0x4, offset = 0x4, fixed_abs, tag = 'smem constant byte address 0x4 - core index']
  #allocation1 [shape = 'u32[72,128]{1,0:T(1,128)}', space=vmem, size = 0x9000, scoped, tag = 'internal scratch']
  %s0 = inlined_call_operand.hbm [shape: f32[3,3], index: 0, kind: input, shape index: {}]
  %s1 = inlined_call_operand.hbm [shape: f32[3,3], index: 1, kind: input, shape index: {}]
  %s2 = inlined_call_operand.hbm [shape: f32[3,8], index: 2, kind: input, shape index: {}]
  %s3 = inlined_call_operand.hbm [shape: f32[3,8], index: 3, kind: output, shape index: {}]
  %s4 = sld [smem:[#allocation0]]
  $region34: #{tpu_custom_call.1} parent=0
    _
  %s6 = ssub.s32 1, %s4
  %s7 = scalar_select 0, %s6, %s4
  $region1: #{tpu_custom_call.1} parent=0
    #allocation2 [shape = 'u8[2048]{0}', space=vmem, size = 0x800, scoped, tag = 'input window, operand 0, single buffered']
    #allocation3 [shape = 's32[1]{0}', space=sflag, size = 0x4, scoped, tag = 'scoped memory for tpu_custom_call.1']
    #allocation4 [shape = 's32[1]{0}', space=sflag, size = 0x4, scoped, tag = 'scoped memory for tpu_custom_call.1']
    #allocation5 [shape = 'u8[2048]{0}', space=vmem, size = 0x800, scoped, tag = 'input window, operand 1, single buffered']
    #allocation6 [shape = 's32[1]{0}', space=sflag, size = 0x4, scoped, tag = 'scoped memory for tpu_custom_call.1']
    #allocation7 [shape = 'u8[2048]{0}', space=vmem, size = 0x800, scoped, tag = 'input window, operand 2, single buffered']
    #allocation8 [shape = 'u8[2048]{0}', space=vmem, size = 0x800, scoped, tag = 'output window, operand 0, single buffered']
    %8 = vsyncpa [#allocation3], 0
    %9 = vsyncpa [#allocation6], 0
    %10 = vsyncpa [#allocation4], 0
    // Predicated region
    $region2: #{tpu_custom_call.1} parent=1 // pred_check
      _
    $region3: #{tpu_custom_call.1} parent=1 // pred_check_branch
      %12 = sbr.rel (0) target = $region5
    $region4: #{tpu_custom_call.1} parent=1 // pred_region
      %14 = vsyncadd [#allocation3], 0
      %s16 = sshll.u32 %s0, 4
      %s17 = int_to_ptr.hbm [resolvable:$true] %s16
      %s18 = sshll.u32 [#allocation2], 4
      %s19 = int_to_ptr.vmem [resolvable:$true] %s18
      %21 = dma.hbm_to_vmem [thread:$0]  %s17, 64, %s19, [#allocation3]
    $region5: #{tpu_custom_call.1} parent=1 // pred_fallthru
      _
    // Predicated region
    $region6: #{tpu_custom_call.1} parent=1 // pred_check
      _
    $region7: #{tpu_custom_call.1} parent=1 // pred_check_branch
      %23 = sbr.rel (0) target = $region9
    $region8: #{tpu_custom_call.1} parent=1 // pred_region
      %25 = vsyncadd [#allocation6], 0
      %s27 = sshll.u32 %s1, 4
      %s28 = int_to_ptr.hbm [resolvable:$true] %s27
      %s29 = sshll.u32 [#allocation5], 4
      %s30 = int_to_ptr.vmem [resolvable:$true] %s29
      %32 = dma.hbm_to_vmem [thread:$0]  %s28, 64, %s30, [#allocation6]
    $region9: #{tpu_custom_call.1} parent=1 // pred_fallthru
      _
    // Predicated region
    $region10: #{tpu_custom_call.1} parent=1 // pred_check
      _
    $region11: #{tpu_custom_call.1} parent=1 // pred_check_branch
      %34 = sbr.rel (0) target = $region13
    $region12: #{tpu_custom_call.1} parent=1 // pred_region
      %36 = vsyncadd [#allocation6], 0
      %s38 = sshll.u32 %s2, 4
      %s39 = int_to_ptr.hbm [resolvable:$true] %s38
      %s40 = sshll.u32 [#allocation7], 4
      %s41 = int_to_ptr.vmem [resolvable:$true] %s40
      %43 = dma.hbm_to_vmem [thread:$0]  %s39, 64, %s41, [#allocation6]
    $region13: #{tpu_custom_call.1} parent=1 // pred_fallthru
      _
    // Predicated region
    $region14: #{tpu_custom_call.1} parent=1 // pred_check
      _
    $region15: #{tpu_custom_call.1} parent=1 // pred_check_branch
      %45 = sbr.rel (0) target = $region17
    $region16: #{tpu_custom_call.1} parent=1 // pred_region
      %47 = dma.done [#allocation3], 64
    $region17: #{tpu_custom_call.1} parent=1 // pred_fallthru
      _
    // Predicated region
    $region18: #{tpu_custom_call.1} parent=1 // pred_check
      _
    $region19: #{tpu_custom_call.1} parent=1 // pred_check_branch
      %49 = sbr.rel (0) target = $region21
    $region20: #{tpu_custom_call.1} parent=1 // pred_region
      %51 = dma.done [#allocation6], 64
    $region21: #{tpu_custom_call.1} parent=1 // pred_fallthru
      _
    // Predicated region
    $region22: #{tpu_custom_call.1} parent=1 // pred_check
      _
    $region23: #{tpu_custom_call.1} parent=1 // pred_check_branch
      %53 = sbr.rel (0) target = $region25
    $region24: #{tpu_custom_call.1} parent=1 // pred_region
      %55 = dma.done [#allocation6], 64
    $region25: #{tpu_custom_call.1} parent=1 // pred_fallthru
      _
    %v56 = vld [vmem:[#allocation7] sm:$0x7]
    %v57 = vld [vmem:[#allocation2] sm:$0x7]
    %v58 = vld [vmem:[#allocation5] sm:$0x7]
    %60 = vset.pattern.permute.xlu0 0
    %61 = vperm.xlu0 %60, %v57
    %v62 = vpop.permute.xlu0 %61
    %v64 = vperm.slane %v56, 0
    %v65 = vmul.f32 %v62, %v64
    %66 = vset.pattern.permute.xlu0 1
    %67 = vperm.xlu0 %66, %v57
    %v68 = vpop.permute.xlu0 %67
    %v70 = vperm.slane %v56, 1
    %v71 = vmul.f32 %v68, %v70
    %v72 = vadd.f32 %v65, %v71
    %73 = vset.pattern.permute.xlu0 2
    %74 = vperm.xlu0 %73, %v57
    %v75 = vpop.permute.xlu0 %74
    %v77 = vperm.slane %v56, 2
    %v78 = vmul.f32 %v75, %v77
    %v79 = vadd.f32 %v72, %v78
    %v80 = vmax.f32 %v79, 0.0
    %82 = vset.pattern.permute.xlu0 0
    %83 = vperm.xlu0 %82, %v58
    %v84 = vpop.permute.xlu0 %83
    %v86 = vperm.slane %v80, 0
    %v87 = vmul.f32 %v84, %v86
    %88 = vset.pattern.permute.xlu0 1
    %89 = vperm.xlu0 %88, %v58
    %v90 = vpop.permute.xlu0 %89
    %v92 = vperm.slane %v80, 1
    %v93 = vmul.f32 %v90, %v92
    %v94 = vadd.f32 %v87, %v93
    %95 = vset.pattern.permute.xlu0 2
    %96 = vperm.xlu0 %95, %v58
    %v97 = vpop.permute.xlu0 %96
    %v99 = vperm.slane %v80, 2
    %v100 = vmul.f32 %v97, %v99
    %v101 = vadd.f32 %v94, %v100
    %102 = vst [vmem:[#allocation8] sm:$0x7] %v101
    // Predicated region
    $region26: #{tpu_custom_call.1} parent=1 // pred_check
      _
    $region27: #{tpu_custom_call.1} parent=1 // pred_check_branch
      %104 = sbr.rel (0) target = $region29
    $region28: #{tpu_custom_call.1} parent=1 // pred_region
      %106 = vsyncadd [#allocation4], 0
      %s108 = sshll.u32 [#allocation8], 4
      %s109 = int_to_ptr.vmem [resolvable:$true] %s108
      %s110 = sshll.u32 %s3, 4
      %s111 = int_to_ptr.hbm [resolvable:$true] %s110
      %113 = dma.vmem_to_hbm [thread:$0]  %s109, 64, %s111, [#allocation4]
    $region29: #{tpu_custom_call.1} parent=1 // pred_fallthru
      _
    // Predicated region
    $region30: #{tpu_custom_call.1} parent=1 // pred_check
      _
    $region31: #{tpu_custom_call.1} parent=1 // pred_check_branch
      %115 = sbr.rel (0) target = $region33
    $region32: #{tpu_custom_call.1} parent=1 // pred_region
      %117 = dma.done [#allocation4], 64
    $region33: #{tpu_custom_call.1} parent=1 // pred_fallthru
      _
    %118 = vsyncpa [#allocation3], 1
    %119 = vsyncpa [#allocation6], 1
    %120 = vsyncpa [#allocation4], 1

</llo_original>
